<compile_context>
chip_gen: v5e
topology: v5e:2x2
jax: 0.10.0
libtpu: 0.0.40
codegen_flags: <defaults>
</compile_context>

<pallas_src>
import functools
import math

import jax
import jax.numpy as jnp
from jax import lax
from jax.experimental import pallas as pl
from jax.experimental.pallas import tpu as pltpu


NEG_INF = -1e30  # large-but-finite mask value (safe even if scores move to bf16)
VMEM_LIMIT_BYTES = 48 * 1024 * 1024  # > v5e's 16 MiB default, < v7x's 64 MiB physical


def _pick_tile(dim, target, multiple):
    """Largest power-of-two-scaled tile <= target that divides `dim` and is a
    multiple of `multiple`; falls back to the full dimension (always layout-legal)."""
    t = target
    while t >= multiple:
        if dim % t == 0:
            return t
        t //= 2
    return dim


# ----------------------------------------------------------------------------
# Kernel 1: Conv1D (linear):  out[M, N] = x[M, K] @ w[K, N] + b[N]
#   bf16 operands, f32 accumulation.  Single-K-step fast path (2-D grid, both
#   axes "parallel") when the whole contraction fits in one tile; otherwise a
#   3-D grid with a VMEM f32 accumulator over the K ("arbitrary") axis.
# ----------------------------------------------------------------------------
def _linear_bias_kernel(x_ref, w_ref, b_ref, o_ref):
    acc = jnp.dot(x_ref[...], w_ref[...], preferred_element_type=jnp.float32)
    o_ref[...] = (acc + b_ref[...].astype(jnp.float32)).astype(o_ref.dtype)


def _linear_bias_acc_kernel(x_ref, w_ref, b_ref, o_ref, acc_ref):
    k = pl.program_id(2)

    @pl.when(k == 0)
    def _():
        acc_ref[...] = jnp.zeros_like(acc_ref)

    acc_ref[...] += jnp.dot(x_ref[...], w_ref[...],
                            preferred_element_type=jnp.float32)

    @pl.when(k == pl.num_programs(2) - 1)
    def _():
        o_ref[...] = (acc_ref[...] + b_ref[...].astype(jnp.float32)).astype(o_ref.dtype)


def conv1d_linear(x, w, b, *, out_dtype, tm=512, tn=512, tk=2048):
    """x: [M, K] (bf16), w: [K, N] (bf16), b: [N] (f32) -> [M, N] (out_dtype)."""
    M, K = x.shape
    K2, N = w.shape
    assert K == K2
    tm = _pick_tile(M, tm, 16)     # bf16 rows: multiple of 16 sublanes
    tn = _pick_tile(N, tn, 128)    # lane dim of w / out
    # Full K in one step if it fits the target (GPT-2: K=768 -> single K step).
    tk = K if K <= tk else _pick_tile(K, tk, 128)
    b2 = b.reshape(1, N).astype(jnp.float32)

    if tk == K:
        return pl.pallas_call(
            _linear_bias_kernel,
            grid=(M // tm, N // tn),
            in_specs=[
                pl.BlockSpec((tm, K), lambda i, j: (i, 0)),
                pl.BlockSpec((K, tn), lambda i, j: (0, j)),
                pl.BlockSpec((1, tn), lambda i, j: (0, j)),
            ],
            out_specs=pl.BlockSpec((tm, tn), lambda i, j: (i, j)),
            out_shape=jax.ShapeDtypeStruct((M, N), out_dtype),
            compiler_params=pltpu.CompilerParams(
                dimension_semantics=("parallel", "parallel"),
                vmem_limit_bytes=VMEM_LIMIT_BYTES),
        )(x, w, b2)

    return pl.pallas_call(
        _linear_bias_acc_kernel,
        grid=(M // tm, N // tn, K // tk),
        in_specs=[
            pl.BlockSpec((tm, tk), lambda i, j, k: (i, k)),
            pl.BlockSpec((tk, tn), lambda i, j, k: (k, j)),
            pl.BlockSpec((1, tn), lambda i, j, k: (0, j)),
        ],
        out_specs=pl.BlockSpec((tm, tn), lambda i, j, k: (i, j)),
        out_shape=jax.ShapeDtypeStruct((M, N), out_dtype),
        scratch_shapes=[pltpu.VMEM((tm, tn), jnp.float32)],
        compiler_params=pltpu.CompilerParams(
            dimension_semantics=("parallel", "parallel", "arbitrary"),
            vmem_limit_bytes=VMEM_LIMIT_BYTES),
    )(x, w, b2)


# ----------------------------------------------------------------------------
# Kernel 2: flash-style causal attention (no attention-weights output).
#   qkv: [B, T, 3, H, D] bf16 (q already pre-scaled by 1/sqrt(D)).
#   grid: (B, q-blocks, kv-blocks); kv axis is the reduction ("arbitrary").
#   output: [B, T, H*D] bf16 (lane-dense; head merge is a free reshape).
# ----------------------------------------------------------------------------
def _flash_attn_kernel(q_ref, k_ref, v_ref, o_ref, m_ref, l_ref, acc_ref,
                       *, num_heads, head_dim, block_q, block_kv):
    qi = pl.program_id(1)
    ki = pl.program_id(2)
    q_start = qi * block_q
    kv_start = ki * block_kv

    @pl.when(ki == 0)
    def _():
        m_ref[...] = jnp.full_like(m_ref, NEG_INF)
        l_ref[...] = jnp.zeros_like(l_ref)
        acc_ref[...] = jnp.zeros_like(acc_ref)

    def update(apply_mask):
        q = q_ref[...]        # (bq,  H, D) bf16, pre-scaled by 1/sqrt(D)
        k = k_ref[...]        # (bkv, H, D) bf16
        v = v_ref[...]        # (bkv, H, D) bf16

        # Head-batched QK^T: one batched MXU dot, no per-head sublane slicing.
        s = jnp.einsum("qhd,khd->hqk", q, k,
                       preferred_element_type=jnp.float32)  # (H, bq, bkv) f32
        if apply_mask:
            row = q_start + lax.broadcasted_iota(jnp.int32, (block_q, block_kv), 0)
            col = kv_start + lax.broadcasted_iota(jnp.int32, (block_q, block_kv), 1)
            s = jnp.where((col <= row)[None], s, NEG_INF)

        m_prev = m_ref[...]                                     # (H, bq, 1)
        m_new = jnp.maximum(m_prev, jnp.max(s, axis=-1, keepdims=True))
        alpha = jnp.exp(m_prev - m_new)
        p = jnp.exp(s - m_new)                                  # (H, bq, bkv)
        l_ref[...] = alpha * l_ref[...] + jnp.sum(p, axis=-1, keepdims=True)
        pv = jnp.einsum("hqk,khd->hqd", p.astype(v.dtype), v,
                        preferred_element_type=jnp.float32)     # (H, bq, D)
        acc_ref[...] = alpha * acc_ref[...] + pv
        m_ref[...] = m_new

    # Fully-below-diagonal block: no masking needed at all.
    below = kv_start + block_kv - 1 <= q_start
    # Block crossing the diagonal: mask needed.
    diag = (kv_start <= q_start + block_q - 1) & jnp.logical_not(below)
    # Blocks fully above the diagonal: neither branch runs (and their DMAs were
    # elided by the clamped kv index_map).

    @pl.when(below)
    def _():
        update(apply_mask=False)

    @pl.when(diag)
    def _():
        update(apply_mask=True)

    @pl.when(ki == pl.num_programs(2) - 1)
    def _():
        inv_l = pl.reciprocal(l_ref[...], approx=True)          # EUP slot, (H, bq, 1)
        out = (acc_ref[...] * inv_l).astype(o_ref.dtype)        # (H, bq, D)
        for h in range(num_heads):                              # epilogue-only stores
            o_ref[:, h * head_dim:(h + 1) * head_dim] = out[h]


def flash_causal_attention(qkv, num_heads, head_dim, *, block_q=256, block_kv=512):
    B, T, three, H, D = qkv.shape
    assert three == 3 and H == num_heads and D == head_dim
    C = H * D
    bq = _pick_tile(T, block_q, 16)
    bkv = _pick_tile(T, block_kv, 128)
    assert T % bq == 0 and T % bkv == 0, "sequence length must tile evenly"
    grid = (B, T // bq, T // bkv)

    def q_index(b, qi, ki):
        return (b, qi, 0, 0, 0)

    def kv_index(slot):
        def index(b, qi, ki):
            # Clamp: kv blocks entirely above the causal diagonal re-use the
            # previous block index, so their HBM->VMEM DMA is elided.
            last_useful = ((qi + 1) * bq - 1) // bkv
            return (b, jnp.minimum(ki, last_useful), slot, 0, 0)
        return index

    kernel = functools.partial(_flash_attn_kernel, num_heads=H, head_dim=D,
                               block_q=bq, block_kv=bkv)
    return pl.pallas_call(
        kernel,
        grid=grid,
        in_specs=[
            pl.BlockSpec((None, bq, None, H, D), q_index),
            pl.BlockSpec((None, bkv, None, H, D), kv_index(1)),
            pl.BlockSpec((None, bkv, None, H, D), kv_index(2)),
        ],
        out_specs=pl.BlockSpec((None, bq, C), lambda b, qi, ki: (b, qi, 0)),
        out_shape=jax.ShapeDtypeStruct((B, T, C), qkv.dtype),
        scratch_shapes=[
            pltpu.VMEM((H, bq, 1), jnp.float32),   # running max
            pltpu.VMEM((H, bq, 1), jnp.float32),   # running sum
            pltpu.VMEM((H, bq, D), jnp.float32),   # running output accumulator
        ],
        compiler_params=pltpu.CompilerParams(
            dimension_semantics=("parallel", "parallel", "arbitrary"),
            vmem_limit_bytes=VMEM_LIMIT_BYTES),
    )(qkv, qkv, qkv)


# ----------------------------------------------------------------------------
# Kernel 3: full-softmax causal attention that also emits [B, H, T, T] weights.
#   Only used for output_attentions=True (debug path).  Head-batched matmuls.
# ----------------------------------------------------------------------------
def _attn_with_weights_kernel(q_ref, k_ref, v_ref, o_ref, w_ref,
                              *, num_heads, head_dim, block_q):
    qi = pl.program_id(1)
    q = q_ref[...]     # (bq, H, D) bf16 (pre-scaled)
    k = k_ref[...]     # (T,  H, D) bf16
    v = v_ref[...]     # (T,  H, D) bf16
    T = k.shape[0]

    s = jnp.einsum("qhd,khd->hqk", q, k,
                   preferred_element_type=jnp.float32)          # (H, bq, T)
    row = qi * block_q + lax.broadcasted_iota(jnp.int32, (block_q, T), 0)
    col = lax.broadcasted_iota(jnp.int32, (block_q, T), 1)
    s = jnp.where((col <= row)[None], s, NEG_INF)
    m = jnp.max(s, axis=-1, keepdims=True)
    e = jnp.exp(s - m)
    p = e / jnp.sum(e, axis=-1, keepdims=True)                  # (H, bq, T)
    w_ref[...] = p.astype(w_ref.dtype)
    out = jnp.einsum("hqk,khd->hqd", p.astype(v.dtype), v,
                     preferred_element_type=jnp.float32)        # (H, bq, D)
    out = out.astype(o_ref.dtype)
    for h in range(num_heads):
        o_ref[:, h * head_dim:(h + 1) * head_dim] = out[h]


def causal_attention_with_weights(qkv, num_heads, head_dim, *, block_q=128):
    B, T, three, H, D = qkv.shape
    assert three == 3 and H == num_heads and D == head_dim
    C = H * D
    bq = _pick_tile(T, block_q, 16)
    grid = (B, T // bq)
    kernel = functools.partial(_attn_with_weights_kernel, num_heads=H,
                               head_dim=D, block_q=bq)
    return pl.pallas_call(
        kernel,
        grid=grid,
        in_specs=[
            pl.BlockSpec((None, bq, None, H, D), lambda b, qi: (b, qi, 0, 0, 0)),
            pl.BlockSpec((None, T, None, H, D), lambda b, qi: (b, 0, 1, 0, 0)),
            pl.BlockSpec((None, T, None, H, D), lambda b, qi: (b, 0, 2, 0, 0)),
        ],
        out_specs=(
            pl.BlockSpec((None, bq, C), lambda b, qi: (b, qi, 0)),
            pl.BlockSpec((None, H, bq, T), lambda b, qi: (b, 0, qi, 0)),
        ),
        out_shape=(
            jax.ShapeDtypeStruct((B, T, C), qkv.dtype),
            jax.ShapeDtypeStruct((B, H, T, T), jnp.float32),
        ),
        compiler_params=pltpu.CompilerParams(
            dimension_semantics=("parallel", "parallel"),
            vmem_limit_bytes=VMEM_LIMIT_BYTES),
    )(qkv, qkv, qkv)


# ----------------------------------------------------------------------------
# Module wrapper
# ----------------------------------------------------------------------------
class GaudiGPT2AttentionPallas:
    def __init__(self, hidden_size, num_heads, key):
        assert hidden_size % num_heads == 0
        self.embed_dim = hidden_size
        self.num_heads = num_heads
        self.head_dim = hidden_size // num_heads
        k1, k2, k3, k4 = jax.random.split(key, 4)
        # Conv1D weights: (in_features, out_features), HF GPT-2 convention. Stored f32.
        self.c_attn_w = jax.random.normal(k1, (hidden_size, 3 * hidden_size), jnp.float32) * 0.02
        self.c_attn_b = jax.random.normal(k2, (3 * hidden_size,), jnp.float32) * 0.02
        self.c_proj_w = jax.random.normal(k3, (hidden_size, hidden_size), jnp.float32) * 0.02
        self.c_proj_b = jax.random.normal(k4, (hidden_size,), jnp.float32) * 0.02

        # Kernel-side parameters: 1/sqrt(head_dim) folded into the Q columns of
        # c_attn (weights + bias); matmul operands pre-cast to bf16 (f32 accumulate
        # happens inside the kernels).
        scale = 1.0 / math.sqrt(self.head_dim)
        col_scale = jnp.concatenate([
            jnp.full((hidden_size,), scale, jnp.float32),
            jnp.ones((2 * hidden_size,), jnp.float32),
        ])
        self.c_attn_w_bf16 = (self.c_attn_w * col_scale[None, :]).astype(jnp.bfloat16)
        self.c_attn_b_eff = self.c_attn_b * col_scale      # f32
        self.c_proj_w_bf16 = self.c_proj_w.astype(jnp.bfloat16)

    def __call__(self, hidden_states, output_attentions=False):
        B, T, C = hidden_states.shape
        H, D = self.num_heads, self.head_dim

        x2d = hidden_states.reshape(B * T, C).astype(jnp.bfloat16)
        # Fused QKV projection (bf16 out); reshape to [B, T, 3, H, D] is free, so
        # q/k/v selection and head split happen purely via BlockSpec index_maps.
        qkv = conv1d_linear(x2d, self.c_attn_w_bf16, self.c_attn_b_eff,
                            out_dtype=jnp.bfloat16)
        qkv = qkv.reshape(B, T, 3, H, D)

        if output_attentions:
            attn_out, attn_weights = causal_attention_with_weights(qkv, H, D)
        else:
            attn_out = flash_causal_attention(qkv, H, D)
            attn_weights = None

        # attn_out is already [B, T, H*D]: head merge is a pure reshape.
        out = conv1d_linear(attn_out.reshape(B * T, C), self.c_proj_w_bf16,
                            self.c_proj_b, out_dtype=jnp.float32)
        out = out.reshape(B, T, C)

        present = None  # use_cache=False
        outputs = (out, present)
        if output_attentions:
            outputs += (attn_weights,)
        return outputs


# ----------------------------------------------------------------------------
# Pure-JAX f32 reference
# ----------------------------------------------------------------------------
def reference_forward(mod, x):
    B, T, C = x.shape
    H, D = mod.num_heads, mod.head_dim
    qkv = x.reshape(B * T, C) @ mod.c_attn_w + mod.c_attn_b
    q, k, v = jnp.split(qkv.reshape(B, T, 3 * C), 3, axis=2)

    def sh(t):
        return t.reshape(B, T, H, D).transpose(0, 2, 1, 3)

    q, k, v = sh(q), sh(k), sh(v)
    s = jnp.einsum("bhqd,bhkd->bhqk", q, k) / jnp.sqrt(float(D))
    mask = jnp.tril(jnp.ones((T, T), bool))
    s = jnp.where(mask[None, None], s, jnp.finfo(s.dtype).min)
    p = jax.nn.softmax(s, axis=-1)
    o = jnp.einsum("bhqk,bhkd->bhqd", p, v)
    o = o.transpose(0, 2, 1, 3).reshape(B * T, C)
    out = (o @ mod.c_proj_w + mod.c_proj_b).reshape(B, T, C)
    return out, p


if __name__ == "__main__":
    B, T, C, H = 2, 8, 32, 4  # batch, seq, hidden, heads (head_dim = 8)
    key = jax.random.PRNGKey(0)
    k_param, k_x = jax.random.split(key)

    module = GaudiGPT2AttentionPallas(hidden_size=C, num_heads=H, key=k_param)
    hidden_states = jax.random.normal(k_x, (B, T, C), jnp.float32)

    # Fast path (flash kernel, no attention-weights writeback).
    out, present = module(hidden_states, output_attentions=False)
    out = jax.block_until_ready(out)

    # Debug path (full-softmax kernel that also emits [B, H, T, T] weights).
    out_w, _, attn_weights = module(hidden_states, output_attentions=True)
    out_w = jax.block_until_ready(out_w)
    attn_weights = jax.block_until_ready(attn_weights)

    ref_out, ref_weights = reference_forward(module, hidden_states)
    assert out.shape == (B, T, C)
    assert attn_weights.shape == (B, H, T, T)
    assert jnp.allclose(out, ref_out, atol=2e-2, rtol=2e-2)
    assert jnp.allclose(out_w, ref_out, atol=2e-2, rtol=2e-2)
    assert jnp.allclose(attn_weights, ref_weights, atol=2e-2, rtol=2e-2)

    print("KERNEL_OK")
</pallas_src>

<mosaic_0001>
module attributes {stable_mosaic.version = 11 : i64} {
  func.func @_linear_bias_kernel(%arg0: i32, %arg1: i32, %arg2: memref<16x32xbf16, #tpu.memory_space<vmem>>, %arg3: memref<32x96xbf16, #tpu.memory_space<vmem>>, %arg4: memref<1x96xf32, #tpu.memory_space<vmem>>, %arg5: memref<16x96xbf16, #tpu.memory_space<vmem>>) attributes {dimension_semantics = [#tpu.dimension_semantics<parallel>, #tpu.dimension_semantics<parallel>], iteration_bounds = array<i64: 1, 1>, scalar_prefetch = 0 : i64, scratch_operands = 0 : i64, tpu.core_type = #tpu.core_type<tc>, window_params = [{transform_indices = @transform_0, window_bounds = array<i64: 16, 32>}, {transform_indices = @transform_1, window_bounds = array<i64: 32, 96>}, {transform_indices = @transform_2, window_bounds = array<i64: 1, 96>}, {transform_indices = @transform_3, window_bounds = array<i64: 16, 96>}]} {
    %c0 = arith.constant 0 : index
    %c0_0 = arith.constant 0 : index
    %0 = vector.load %arg2[%c0, %c0_0] : memref<16x32xbf16, #tpu.memory_space<vmem>>, vector<16x32xbf16>
    %c0_1 = arith.constant 0 : index
    %c0_2 = arith.constant 0 : index
    %1 = vector.load %arg3[%c0_1, %c0_2] : memref<32x96xbf16, #tpu.memory_space<vmem>>, vector<32x96xbf16>
    %cst = arith.constant dense<0.000000e+00> : vector<16x96xf32>
    %2 = tpu.matmul %0, %1, %cst {dimension_numbers = #tpu.dot_dimension_numbers<[1], [0], [0], [1], [0, 0, 1, 1], [], []>} : vector<16x32xbf16>, vector<32x96xbf16>, vector<16x96xf32> -> vector<16x96xf32>
    %c0_3 = arith.constant 0 : index
    %c0_4 = arith.constant 0 : index
    %3 = vector.load %arg4[%c0_3, %c0_4] : memref<1x96xf32, #tpu.memory_space<vmem>>, vector<1x96xf32>
    %4 = vector.broadcast %3 : vector<1x96xf32> to vector<16x96xf32>
    %5 = arith.addf %2, %4 : vector<16x96xf32>
    %6 = arith.truncf %5 : vector<16x96xf32> to vector<16x96xbf16>
    %c0_5 = arith.constant 0 : index
    %c0_6 = arith.constant 0 : index
    %7 = vector.load %arg5[%c0_5, %c0_6] : memref<16x96xbf16, #tpu.memory_space<vmem>>, vector<16x96xbf16>
    tpu.vector_store %arg5[%c0_5, %c0_6], %6 {strides = array<i32>} : memref<16x96xbf16, #tpu.memory_space<vmem>>, vector<16x96xbf16>,
    return
  }
  func.func @transform_0(%arg0: i32, %arg1: i32) -> (i32, i32) {
    %c0_i32 = arith.constant 0 : i32
    %c0_i32_0 = arith.constant 0 : i32
    return %arg0, %c0_i32 : i32, i32
  }
  func.func @transform_1(%arg0: i32, %arg1: i32) -> (i32, i32) {
    %c0_i32 = arith.constant 0 : i32
    %c0_i32_0 = arith.constant 0 : i32
    return %c0_i32, %arg1 : i32, i32
  }
  func.func @transform_2(%arg0: i32, %arg1: i32) -> (i32, i32) {
    %c0_i32 = arith.constant 0 : i32
    %c0_i32_0 = arith.constant 0 : i32
    return %c0_i32, %arg1 : i32, i32
  }
  func.func @transform_3(%arg0: i32, %arg1: i32) -> (i32, i32) {
    %c0_i32 = arith.constant 0 : i32
    return %arg0, %arg1 : i32, i32
  }
}

</mosaic_0001>

<llo_original>
// kernel: tpu_custom_call.1
$region0: #{tpu_custom_call.1}
  #allocation0 [shape = 'u32[]', space=smem, size = 0x4, offset = 0x4, fixed_abs, tag = 'smem constant byte address 0x4 - core index']
  #allocation1 [shape = 'u32[72,128]{1,0:T(1,128)}', space=vmem, size = 0x9000, scoped, tag = 'internal scratch']
  %s0 = inlined_call_operand.hbm [shape: bf16[16,32], index: 0, kind: input, shape index: {}]
  %s1 = inlined_call_operand.hbm [shape: bf16[32,96], index: 1, kind: input, shape index: {}]
  %s2 = inlined_call_operand.vmem [shape: f32[1,96], index: 2, kind: input, shape index: {}]
  %s3 = inlined_call_operand.hbm [shape: bf16[16,96], index: 3, kind: output, shape index: {}]
  %s4 = sld [smem:[#allocation0]]
  $region30: #{tpu_custom_call.1} parent=0
    _
  %s6 = ssub.s32 1, %s4
  %s7 = scalar_select 0, %s6, %s4
  $region1: #{tpu_custom_call.1} parent=0
    #allocation2 [shape = 'u8[4096]{0}', space=vmem, size = 0x1000, scoped, tag = 'input window, operand 0, single buffered']
    #allocation3 [shape = 's32[1]{0}', space=sflag, size = 0x4, scoped, tag = 'scoped memory for tpu_custom_call.1']
    #allocation4 [shape = 's32[1]{0}', space=sflag, size = 0x4, scoped, tag = 'scoped memory for tpu_custom_call.1']
    #allocation5 [shape = 'u8[8192]{0}', space=vmem, size = 0x2000, scoped, tag = 'input window, operand 1, single buffered']
    #allocation6 [shape = 's32[1]{0}', space=sflag, size = 0x4, scoped, tag = 'scoped memory for tpu_custom_call.1']
    #allocation7 [shape = 'u8[4096]{0}', space=vmem, size = 0x1000, scoped, tag = 'output window, operand 0, single buffered']
    %8 = vsyncpa [#allocation3], 0
    %9 = vsyncpa [#allocation6], 0
    %10 = vsyncpa [#allocation4], 0
    // Predicated region
    $region2: #{tpu_custom_call.1} parent=1 // pred_check
      _
    $region3: #{tpu_custom_call.1} parent=1 // pred_check_branch
      %12 = sbr.rel (0) target = $region5
    $region4: #{tpu_custom_call.1} parent=1 // pred_region
      %14 = vsyncadd [#allocation3], 0
      %s15 = sshll.u32 %s0, 4
      %s16 = int_to_ptr.hbm [resolvable:$true] %s15
      %s17 = sshll.u32 [#allocation2], 4
      %s18 = int_to_ptr.vmem [resolvable:$true] %s17
      %23 = dma.hbm_to_vmem [thread:$0]  %s16, 128, %s18, [#allocation3], 64, 64, 4
    $region5: #{tpu_custom_call.1} parent=1 // pred_fallthru
      _
    // Predicated region
    $region6: #{tpu_custom_call.1} parent=1 // pred_check
      _
    $region7: #{tpu_custom_call.1} parent=1 // pred_check_branch
      %25 = sbr.rel (0) target = $region9
    $region8: #{tpu_custom_call.1} parent=1 // pred_region
      %27 = vsyncadd [#allocation6], 0
      %s28 = sshll.u32 %s1, 4
      %s29 = int_to_ptr.hbm [resolvable:$true] %s28
      %s30 = sshll.u32 [#allocation5], 4
      %s31 = int_to_ptr.vmem [resolvable:$true] %s30
      %36 = dma.hbm_to_vmem [thread:$0]  %s29, 256, %s31, [#allocation6], 64, 64, 4
    $region9: #{tpu_custom_call.1} parent=1 // pred_fallthru
      _
    // Predicated region
    $region10: #{tpu_custom_call.1} parent=1 // pred_check
      _
    $region11: #{tpu_custom_call.1} parent=1 // pred_check_branch
      %38 = sbr.rel (0) target = $region13
    $region12: #{tpu_custom_call.1} parent=1 // pred_region
      _
    $region13: #{tpu_custom_call.1} parent=1 // pred_fallthru
      _
    // Predicated region
    $region14: #{tpu_custom_call.1} parent=1 // pred_check
      _
    $region15: #{tpu_custom_call.1} parent=1 // pred_check_branch
      %40 = sbr.rel (0) target = $region17
    $region16: #{tpu_custom_call.1} parent=1 // pred_region
      %42 = dma.done [#allocation3], 128
    $region17: #{tpu_custom_call.1} parent=1 // pred_fallthru
      _
    // Predicated region
    $region18: #{tpu_custom_call.1} parent=1 // pred_check
      _
    $region19: #{tpu_custom_call.1} parent=1 // pred_check_branch
      %44 = sbr.rel (0) target = $region21
    $region20: #{tpu_custom_call.1} parent=1 // pred_region
      %46 = dma.done [#allocation6], 256
    $region21: #{tpu_custom_call.1} parent=1 // pred_fallthru
      _
    %v48 = vld [vmem:[#allocation2] sm:$0xf]
    %v49 = vld [vmem:[#allocation2 + $0x4] sm:$0xf]
    %v50 = vld [vmem:[#allocation5] sm:$0xf]
    %v51 = vld [vmem:[#allocation5 + $0x4] sm:$0xf]
    %v52 = vld [vmem:[#allocation5 + $0x8] sm:$0xf]
    %v53 = vld [vmem:[#allocation5 + $0xc] sm:$0xf]
    %v54 = vld [vmem:[%s2] sm:$0x1]
    %v56 = vperm.slane %v54, 0
    %v60 = vunpack.c.l.b16 %v48
    %v61 = vunpack.c.l.b16 %v49
    %v62 = vpack.c.b16 %v61, %v60
    %v67 = vunpack.c.l.b16 %v50
    %v68 = vunpack.c.l.b16 %v51
    %v69 = vunpack.c.l.b16 %v52
    %v70 = vunpack.c.l.b16 %v53
    %v71 = vpack.c.b16 %v68, %v67
    %v72 = vpack.c.b16 %v70, %v69
    %vm75 = vcmask 261120
    %v77 = vsel %vm75, %v62, 0
    %79 = vmatpush.bf16.msra.mxu0 0
    %80 = vmatpush.bf16.msra.mxu0 0
    %81 = vmatpush.bf16.msra.mxu0 0
    %82 = vmatpush.bf16.msra.mxu0 0
    %83 = vmatpush.bf16.msra.mxu0 0
    %84 = vmatpush.bf16.msra.mxu0 0
    %85 = vmatpush.bf16.msra.mxu0 %v72
    %86 = vmatpush.bf16.msra.mxu0 %v71
    %87 = vmatmul.bf16.gmra.mxu0 %v77
    %v88 = vpop.f32.mrf.mxu0
    %v89 = vadd.f32 %v56, %v88
    %v90 = vpop.f32.mrf.mxu0
    %v91 = vadd.f32 %v56, %v90
    %92 = vdwg.mxu0
    %v93 = vpack.c.bf16 %v89, %v89
    %v94 = vpack.c.bf16 %v91, %v91
    %vm95 = vcmask 781312
    %96 = vst.msk [vmem:[#allocation7] sm:$0xf] %vm95, %v93
    %97 = vst.msk [vmem:[#allocation7 + $0x4] sm:$0xf] %vm95, %v94
    // Predicated region
    $region22: #{tpu_custom_call.1} parent=1 // pred_check
      _
    $region23: #{tpu_custom_call.1} parent=1 // pred_check_branch
      %99 = sbr.rel (0) target = $region25
    $region24: #{tpu_custom_call.1} parent=1 // pred_region
      %101 = vsyncadd [#allocation4], 0
      %s102 = sshll.u32 [#allocation7], 4
      %s103 = int_to_ptr.vmem [resolvable:$true] %s102
      %s104 = sshll.u32 %s3, 4
      %s105 = int_to_ptr.hbm [resolvable:$true] %s104
      %110 = dma.vmem_to_hbm [thread:$0]  %s103, 128, %s105, [#allocation4], 64, 64, 4
    $region25: #{tpu_custom_call.1} parent=1 // pred_fallthru
      _
    // Predicated region
    $region26: #{tpu_custom_call.1} parent=1 // pred_check
      _
    $region27: #{tpu_custom_call.1} parent=1 // pred_check_branch
      %112 = sbr.rel (0) target = $region29
    $region28: #{tpu_custom_call.1} parent=1 // pred_region
      %114 = dma.done [#allocation4], 128
    $region29: #{tpu_custom_call.1} parent=1 // pred_fallthru
      _
    %115 = vsyncpa [#allocation3], 1
    %116 = vsyncpa [#allocation6], 1
    %117 = vsyncpa [#allocation4], 1

</llo_original>
